<compile_context>
chip_gen: v5e
topology: v5e:2x2
jax: 0.10.0
libtpu: 0.0.40
codegen_flags: <defaults>
</compile_context>

<pallas_src>
import jax
import jax.numpy as jnp
from jax.experimental import pallas as pl
from jax.experimental.pallas import tpu as pltpu


_NUM_ACTIVE = 10
_NUM_ZERO = 968
_FEATURE_DIM = _NUM_ACTIVE + _NUM_ZERO  # 978


def _coef():
    return jnp.concatenate(
        [jnp.ones((_NUM_ACTIVE,), jnp.float32),
         jnp.zeros((_NUM_ZERO,), jnp.float32)]
    ).reshape(1, _FEATURE_DIM)


def _wmse_kernel(pred_ref, true_ref, coef_ref, out_ref, acc_ref):
    i = pl.program_id(0)

    @pl.when(i == 0)
    def _():
        acc_ref[...] = jnp.zeros_like(acc_ref)

    # Fused elementwise squared difference; VPU-only work in the inner loop.
    d = pred_ref[...].astype(jnp.float32) - true_ref[...].astype(jnp.float32)
    acc_ref[...] += d * d

    @pl.when(i == pl.num_programs(0) - 1)
    def _():
        # sum_b (p-t)^2 * coef == (sum_b (p-t)^2) * coef : apply coef once,
        # single cross-lane reduce at finalize, scalar store to SMEM.
        out_ref[0, 0] = jnp.sum(acc_ref[...] * coef_ref[...])


def test_loss_function_forward(pred, true, *, batch_tile=128):
    """pred, true: [batch, 978] -> scalar float32 loss (matches torch module)."""
    assert pred.shape == true.shape and pred.shape[-1] == _FEATURE_DIM
    B, D = pred.shape

    # Batch tile: multiple of 8 sublanes; pad batch with zero rows
    # (zero rows contribute exactly 0 to the loss).
    tb = min(int(batch_tile), max(int(B), 1))
    tb = 8 * pl.cdiv(tb, 8)
    pad = (-B) % tb
    if pad:
        pred = jnp.pad(pred, ((0, pad), (0, 0)))
        true = jnp.pad(true, ((0, pad), (0, 0)))
    grid = ((B + pad) // tb,)

    out = pl.pallas_call(
        _wmse_kernel,
        out_shape=jax.ShapeDtypeStruct((1, 1), jnp.float32),
        grid_spec=pltpu.PrefetchScalarGridSpec(
            num_scalar_prefetch=0,
            grid=grid,
            in_specs=[
                pl.BlockSpec((tb, D), lambda i: (i, 0)),   # pred tile
                pl.BlockSpec((tb, D), lambda i: (i, 0)),   # true tile
                pl.BlockSpec((1, D), lambda i: (0, 0)),    # coef, resident
            ],
            out_specs=pl.BlockSpec(memory_space=pltpu.MemorySpace.SMEM),
            scratch_shapes=[pltpu.VMEM((tb, D), jnp.float32)],
        ),
        compiler_params=pltpu.CompilerParams(
            # single grid axis is a reduction into a shared accumulator/output
            dimension_semantics=("arbitrary",),
        ),
    )(pred.astype(jnp.float32), true.astype(jnp.float32), _coef())
    return out[0, 0]


def _reference_loss(pred, true):
    """Pure-JAX reference mirroring the torch forward pass."""
    coef = _coef()
    d = pred.astype(jnp.float32) - true.astype(jnp.float32)
    return jnp.sum((d * d) * coef)


if __name__ == "__main__":
    key = jax.random.PRNGKey(0)
    k1, k2 = jax.random.split(key)
    batch = 16
    pred = jax.random.normal(k1, (batch, _FEATURE_DIM), dtype=jnp.float32)
    true = jax.random.normal(k2, (batch, _FEATURE_DIM), dtype=jnp.float32)

    # batch_tile=8 -> grid of 2 steps, exercising the scratch accumulator path.
    loss = test_loss_function_forward(pred, true, batch_tile=8)
    jax.block_until_ready(loss)

    ref = _reference_loss(pred, true)
    assert jnp.allclose(loss, ref, rtol=1e-5, atol=1e-5), (loss, ref)

    print("KERNEL_OK")
</pallas_src>

<mosaic_0001>
module attributes {stable_mosaic.version = 11 : i64} {
  func.func @_wmse_kernel(%arg0: i32, %arg1: memref<8x978xf32, #tpu.memory_space<vmem>>, %arg2: memref<8x978xf32, #tpu.memory_space<vmem>>, %arg3: memref<1x978xf32, #tpu.memory_space<vmem>>, %arg4: memref<1x1xf32, #tpu.memory_space<smem>>, %arg5: memref<8x978xf32, #tpu.memory_space<vmem>>) attributes {dimension_semantics = [#tpu.dimension_semantics<arbitrary>], iteration_bounds = array<i64: 2>, scalar_prefetch = 0 : i64, scratch_operands = 1 : i64, tpu.core_type = #tpu.core_type<tc>, window_params = [{transform_indices = @transform_0, window_bounds = array<i64: 8, 978>}, {transform_indices = @transform_1, window_bounds = array<i64: 8, 978>}, {pipeline_mode = #tpu.pipeline_mode<synchronous>, transform_indices = @transform_2, window_bounds = array<i64: 1, 978>}, {transform_indices = @transform_3, window_bounds = array<i64: 1, 1>}]} {
    %c0_i32 = arith.constant 0 : i32
    %0 = arith.cmpi eq, %arg0, %c0_i32 : i32
    %1 = arith.extui %0 : i1 to i32
    %c0_i32_0 = arith.constant 0 : i32
    %2 = arith.cmpi ne, %1, %c0_i32_0 : i32
    scf.if %2 {
      %cst = arith.constant 0.000000e+00 : f32
      %13 = vector.broadcast %cst : f32 to vector<8x978xf32>
      %c0_9 = arith.constant 0 : index
      %c0_10 = arith.constant 0 : index
      %14 = vector.load %arg5[%c0_9, %c0_10] : memref<8x978xf32, #tpu.memory_space<vmem>>, vector<8x978xf32>
      tpu.vector_store %arg5[%c0_9, %c0_10], %13 {strides = array<i32>} : memref<8x978xf32, #tpu.memory_space<vmem>>, vector<8x978xf32>,
    } else {
    }
    %c0 = arith.constant 0 : index
    %c0_1 = arith.constant 0 : index
    %3 = vector.load %arg1[%c0, %c0_1] : memref<8x978xf32, #tpu.memory_space<vmem>>, vector<8x978xf32>
    %c0_2 = arith.constant 0 : index
    %c0_3 = arith.constant 0 : index
    %4 = vector.load %arg2[%c0_2, %c0_3] : memref<8x978xf32, #tpu.memory_space<vmem>>, vector<8x978xf32>
    %5 = arith.subf %3, %4 : vector<8x978xf32>
    %c0_4 = arith.constant 0 : index
    %c0_5 = arith.constant 0 : index
    %6 = vector.load %arg5[%c0_4, %c0_5] : memref<8x978xf32, #tpu.memory_space<vmem>>, vector<8x978xf32>
    %7 = arith.mulf %5, %5 : vector<8x978xf32>
    %8 = arith.addf %6, %7 : vector<8x978xf32>
    %c0_6 = arith.constant 0 : index
    %c0_7 = arith.constant 0 : index
    %9 = vector.load %arg5[%c0_6, %c0_7] : memref<8x978xf32, #tpu.memory_space<vmem>>, vector<8x978xf32>
    tpu.vector_store %arg5[%c0_6, %c0_7], %8 {strides = array<i32>} : memref<8x978xf32, #tpu.memory_space<vmem>>, vector<8x978xf32>,
    %c1_i32 = arith.constant 1 : i32
    %10 = arith.cmpi eq, %arg0, %c1_i32 : i32
    %11 = arith.extui %10 : i1 to i32
    %c0_i32_8 = arith.constant 0 : i32
    %12 = arith.cmpi ne, %11, %c0_i32_8 : i32
    scf.if %12 {
      %c0_9 = arith.constant 0 : index
      %c0_10 = arith.constant 0 : index
      %13 = vector.load %arg5[%c0_9, %c0_10] : memref<8x978xf32, #tpu.memory_space<vmem>>, vector<8x978xf32>
      %c0_11 = arith.constant 0 : index
      %c0_12 = arith.constant 0 : index
      %14 = vector.load %arg3[%c0_11, %c0_12] : memref<1x978xf32, #tpu.memory_space<vmem>>, vector<1x978xf32>
      %15 = vector.broadcast %14 : vector<1x978xf32> to vector<8x978xf32>
      %16 = arith.mulf %13, %15 : vector<8x978xf32>
      %17 = vector.shape_cast %16 : vector<8x978xf32> to vector<1x8x978xf32>
      %cst = arith.constant dense<0.000000e+00> : vector<1xf32>
      %18 = vector.multi_reduction <add>, %17, %cst [1, 2] : vector<1x8x978xf32> to vector<1xf32>
      %19 = vector.shape_cast %18 : vector<1xf32> to vector<1x1x1xf32>
      %20 = vector.extract %19[0, 0, 0] : f32 from vector<1x1x1xf32>
      %c0_13 = arith.constant 0 : index
      %c0_14 = arith.constant 0 : index
      %21 = memref.load %arg4[%c0_13, %c0_14] : memref<1x1xf32, #tpu.memory_space<smem>>
      memref.store %20, %arg4[%c0_13, %c0_14] : memref<1x1xf32, #tpu.memory_space<smem>>
    } else {
    }
    return
  }
  func.func @transform_0(%arg0: i32) -> (i32, i32) {
    %c0_i32 = arith.constant 0 : i32
    %c0_i32_0 = arith.constant 0 : i32
    return %arg0, %c0_i32 : i32, i32
  }
  func.func @transform_1(%arg0: i32) -> (i32, i32) {
    %c0_i32 = arith.constant 0 : i32
    %c0_i32_0 = arith.constant 0 : i32
    return %arg0, %c0_i32 : i32, i32
  }
  func.func @transform_2(%arg0: i32) -> (i32, i32) {
    %c0_i32 = arith.constant 0 : i32
    %c0_i32_0 = arith.constant 0 : i32
    %c0_i32_1 = arith.constant 0 : i32
    return %c0_i32, %c0_i32_0 : i32, i32
  }
  func.func @transform_3(%arg0: i32) -> (i32, i32) {
    %c0_i32 = arith.constant 0 : i32
    %c0_i32_0 = arith.constant 0 : i32
    %c0_i32_1 = arith.constant 0 : i32
    return %c0_i32, %c0_i32_0 : i32, i32
  }
}

</mosaic_0001>

<llo_original>
// kernel: tpu_custom_call.1
$region0: #{tpu_custom_call.1}
  #allocation0 [shape = 'u32[]', space=smem, size = 0x4, offset = 0x4, fixed_abs, tag = 'smem constant byte address 0x4 - core index']
  #allocation1 [shape = 'u32[72,128]{1,0:T(1,128)}', space=vmem, size = 0x9000, scoped, tag = 'internal scratch']
  #allocation2 [shape = 'f32[8,978]{1,0:T(8,128)}', space=vmem, size = 0x8000, scoped, tag = 'scratch operand']
  %s0 = inlined_call_operand.hbm [shape: f32[16,978], index: 0, kind: input, shape index: {}]
  %s1 = inlined_call_operand.hbm [shape: f32[16,978], index: 1, kind: input, shape index: {}]
  %s2 = inlined_call_operand.hbm [shape: f32[1,978], index: 2, kind: input, shape index: {}]
  %s3 = inlined_call_operand.hbm [shape: f32[1,1], index: 3, kind: output, shape index: {}]
  %s4 = sld [smem:[#allocation0]]
  $region65: #{tpu_custom_call.1} parent=0
    _
  %s6 = ssub.s32 1, %s4
  %s7 = scalar_select 0, %s6, %s4
  $region1: #{tpu_custom_call.1} parent=0
    #allocation3 [shape = 'u8[65536]{0}', space=vmem, size = 0x10000, scoped, tag = 'input window, operand 0']
    #allocation4 [shape = 's32[2]{0}', space=sflag, size = 0x8, scoped, tag = 'scoped memory for tpu_custom_call.1']
    #allocation5 [shape = 's32[2]{0}', space=sflag, size = 0x8, scoped, tag = 'scoped memory for tpu_custom_call.1']
    #allocation6 [shape = 'u8[65536]{0}', space=vmem, size = 0x10000, scoped, tag = 'input window, operand 1']
    #allocation7 [shape = 's32[2]{0}', space=sflag, size = 0x8, scoped, tag = 'scoped memory for tpu_custom_call.1']
    #allocation8 [shape = 'u8[4096]{0}', space=vmem, size = 0x1000, scoped, tag = 'input window, operand 2, single buffered']
    #allocation9 [shape = 'u8[512]{0}', space=smem, size = 0x200, scoped, tag = 'output window, operand 0, single buffered']
    %8 = vsyncpa [#allocation4], 0
    %s9 = scalar_lea.sflag [#allocation4], 1
    %10 = vsyncpa %s9, 0
    %11 = vsyncpa [#allocation7], 0
    %s12 = scalar_lea.sflag [#allocation7], 1
    %13 = vsyncpa %s12, 0
    %14 = vsyncpa [#allocation5], 0
    loop: start=0, step=1, limit=4
    $region2: #{tpu_custom_call.1} parent=1 // loop_pre_header
      _
    $region3: #{tpu_custom_call.1} parent=1 // loop_header
      %s16 = sphi 0, %s20
      %p17 = scmp.ge.s32.totalorder %s16, 4
      %s26 = sphi 0, %s28
      %s29 = sphi 0, %s26
      %s30 = sphi 0, %s29
      %s46 = sphi 0, %s30
      %s52 = sphi 0, %s54
      %s55 = sphi 0, %s52
      %s56 = sphi 0, %s55
      %s72 = sphi 0, %s56
      %s76 = sphi 0, %s76
      %s78 = sphi 0, %s76
      %s79 = sphi 0, %s78
      %s93 = sphi 0, %s79
      %s97 = sphi 0, %s97
      %s99 = sphi 0, %s97
      %s100 = sphi 0, %s99
      %s114 = sphi 0, %s100
    $region4: #{tpu_custom_call.1} parent=1 // loop_header_branch
      %19 = sbr.rel (%p17) target = $region8
    $region5: #{tpu_custom_call.1} parent=1 // loop_body
      %s21 = ssub.s32 %s16, 1
      %s22 = ssub.s32 %s16, 2
      %s23 = sadd.s32 %s16, 1
      %s24 = ssub.s32 %s16, %s23
      %p25 = scmp.eq.s32.totalorder %s24, 0
      %s27 = sadd.s32 %s26, 1
      %s28 = scalar_select %p25, %s26, %s27
      %p31 = pneg %p25
      %p32 = scmp.eq.s32.totalorder %s16, 1
      %p33 = por %p31, %p32
      %p34 = scmp.ne.s32.totalorder %s26, %s29
      %p35 = scmp.eq.s32.totalorder %s16, 0
      %p36 = por %p34, %p35
      %p37 = scmp.ne.s32.totalorder %s26, %s29
      %p38 = scmp.eq.s32.totalorder %s21, 1
      %p39 = por %p37, %p38
      %p40 = scmp.ne.s32.totalorder %s29, %s30
      %p41 = scmp.eq.s32.totalorder %s21, 0
      %p42 = por %p40, %p41
      %p43 = scmp.ne.s32.totalorder %s29, %s30
      %p44 = scmp.eq.s32.totalorder %s22, 1
      %p45 = por %p43, %p44
      %p47 = scmp.ne.s32.totalorder %s30, %s46
      %p48 = scmp.eq.s32.totalorder %s22, 0
      %p49 = por %p47, %p48
      %s50 = ssub.s32 %s16, %s23
      %p51 = scmp.eq.s32.totalorder %s50, 0
      %s53 = sadd.s32 %s52, 1
      %s54 = scalar_select %p51, %s52, %s53
      %p57 = pneg %p51
      %p58 = scmp.eq.s32.totalorder %s16, 1
      %p59 = por %p57, %p58
      %p60 = scmp.ne.s32.totalorder %s52, %s55
      %p61 = scmp.eq.s32.totalorder %s16, 0
      %p62 = por %p60, %p61
      %p63 = scmp.ne.s32.totalorder %s52, %s55
      %p64 = scmp.eq.s32.totalorder %s21, 1
      %p65 = por %p63, %p64
      %p66 = scmp.ne.s32.totalorder %s55, %s56
      %p67 = scmp.eq.s32.totalorder %s21, 0
      %p68 = por %p66, %p67
      %p69 = scmp.ne.s32.totalorder %s55, %s56
      %p70 = scmp.eq.s32.totalorder %s22, 1
      %p71 = por %p69, %p70
      %p73 = scmp.ne.s32.totalorder %s56, %s72
      %p74 = scmp.eq.s32.totalorder %s22, 0
      %p75 = por %p73, %p74
      %s77 = sadd.s32 %s76, 1
      %p80 = scmp.eq.s32.totalorder %s16, 1
      %p81 = scmp.ne.s32.totalorder %s76, %s78
      %p82 = scmp.eq.s32.totalorder %s16, 0
      %p83 = por %p81, %p82
      %p84 = scmp.ne.s32.totalorder %s76, %s78
      %p85 = scmp.eq.s32.totalorder %s21, 1
      %p86 = por %p84, %p85
      %p87 = scmp.ne.s32.totalorder %s78, %s79
      %p88 = scmp.eq.s32.totalorder %s21, 0
      %p89 = por %p87, %p88
      %p90 = scmp.ne.s32.totalorder %s78, %s79
      %p91 = scmp.eq.s32.totalorder %s22, 1
      %p92 = por %p90, %p91
      %p94 = scmp.ne.s32.totalorder %s79, %s93
      %p95 = scmp.eq.s32.totalorder %s22, 0
      %p96 = por %p94, %p95
      %s98 = sadd.s32 %s97, 1
      %p101 = scmp.eq.s32.totalorder %s16, 1
      %p102 = scmp.ne.s32.totalorder %s97, %s99
      %p103 = scmp.eq.s32.totalorder %s16, 0
      %p104 = por %p102, %p103
      %p105 = scmp.ne.s32.totalorder %s97, %s99
      %p106 = scmp.eq.s32.totalorder %s21, 1
      %p107 = por %p105, %p106
      %p108 = scmp.ne.s32.totalorder %s99, %s100
      %p109 = scmp.eq.s32.totalorder %s21, 0
      %p110 = por %p108, %p109
      %p111 = scmp.ne.s32.totalorder %s99, %s100
      %p112 = scmp.eq.s32.totalorder %s22, 1
      %p113 = por %p111, %p112
      %p115 = scmp.ne.s32.totalorder %s100, %s114
      %p116 = scmp.eq.s32.totalorder %s22, 0
      %p117 = por %p115, %p116
      %p118 = scmp.le.s32.totalorder 1, %s16
      %p119 = scmp.lt.s32.totalorder %s16, 3
      %p120 = pnand %p118, %p119
      %p121 = pneg %p120
      // Predicated region
      $region9: #{tpu_custom_call.1} parent=5 // pred_check
        _
      $region10: #{tpu_custom_call.1} parent=5 // pred_check_branch
        %123 = sbr.rel (%p120) target = $region12
      $region11: #{tpu_custom_call.1} parent=5 // pred_region
        %s124 = ssub.s32 %s16, 1
        // Predicated region
        $region13: #{tpu_custom_call.1} parent=11 // pred_check
          %p125 = pneg %p89
        $region14: #{tpu_custom_call.1} parent=11 // pred_check_branch
          %127 = sbr.rel (%p125) target = $region16
        $region15: #{tpu_custom_call.1} parent=11 // pred_region
          %129 = vsyncadd [#allocation7], 0
          %s131 = sshll.u32 %s2, 4
          %s132 = int_to_ptr.hbm [resolvable:$true] %s131
          %s133 = sshll.u32 [#allocation8], 4
          %s134 = int_to_ptr.vmem [resolvable:$true] %s133
          %136 = dma.hbm_to_vmem [thread:$0]  %s132, 128, %s134, [#allocation7]
        $region16: #{tpu_custom_call.1} parent=11 // pred_fallthru
          _
      $region12: #{tpu_custom_call.1} parent=5 // pred_fallthru
        _
      %p137 = scmp.lt.s32.totalorder %s16, 2
      // Predicated region
      $region17: #{tpu_custom_call.1} parent=5 // pred_check
        %p138 = pneg %p137
      $region18: #{tpu_custom_call.1} parent=5 // pred_check_branch
        %140 = sbr.rel (%p138) target = $region20
      $region19: #{tpu_custom_call.1} parent=5 // pred_region
        // Predicated region
        $region21: #{tpu_custom_call.1} parent=19 // pred_check
          %p141 = pneg %p36
        $region22: #{tpu_custom_call.1} parent=19 // pred_check_branch
          %143 = sbr.rel (%p141) target = $region24
        $region23: #{tpu_custom_call.1} parent=19 // pred_region
          %s144 = sand.u32 %s26, 1
          %s145 = scalar_lea.sflag [#allocation4], %s144
          %s146 = sand.u32 %s26, 1
          %s147 = smul.addr %s146, 64
          %s148 = scalar_lea.vmem [#allocation3], %s147
          %150 = vsyncadd %s145, 0
          %s151 = smul.addr %s16, 8
          %s152 = smul.addr %s151, 8
          %s153 = scalar_lea.hbm %s0, %s152
          %s155 = sshll.u32 %s153, 4
          %s156 = int_to_ptr.hbm [resolvable:$true] %s155
          %s157 = sshll.u32 %s148, 4
          %s158 = int_to_ptr.vmem [resolvable:$true] %s157
          %160 = dma.hbm_to_vmem [thread:$0]  %s156, 1024, %s158, %s145
        $region24: #{tpu_custom_call.1} parent=19 // pred_fallthru
          _
        // Predicated region
        $region25: #{tpu_custom_call.1} parent=19 // pred_check
          %p161 = pneg %p62
        $region26: #{tpu_custom_call.1} parent=19 // pred_check_branch
          %163 = sbr.rel (%p161) target = $region28
        $region27: #{tpu_custom_call.1} parent=19 // pred_region
          %s164 = sand.u32 %s16, 1
          %s165 = scalar_lea.sflag [#allocation7], %s164
          %s166 = sand.u32 %s52, 1
          %s167 = smul.addr %s166, 64
          %s168 = scalar_lea.vmem [#allocation6], %s167
          %170 = vsyncadd %s165, 0
          %s171 = smul.addr %s16, 8
          %s172 = smul.addr %s171, 8
          %s173 = scalar_lea.hbm %s1, %s172
          %s175 = sshll.u32 %s173, 4
          %s176 = int_to_ptr.hbm [resolvable:$true] %s175
          %s177 = sshll.u32 %s168, 4
          %s178 = int_to_ptr.vmem [resolvable:$true] %s177
          %180 = dma.hbm_to_vmem [thread:$0]  %s176, 1024, %s178, %s165
        $region28: #{tpu_custom_call.1} parent=19 // pred_fallthru
          _
      $region20: #{tpu_custom_call.1} parent=5 // pred_fallthru
        _
      %p181 = scmp.le.s32.totalorder 1, %s16
      %p182 = scmp.lt.s32.totalorder %s16, 3
      %p183 = pnand %p181, %p182
      %p184 = pneg %p183
      // Predicated region
      $region29: #{tpu_custom_call.1} parent=5 // pred_check
        _
      $region30: #{tpu_custom_call.1} parent=5 // pred_check_branch
        %186 = sbr.rel (%p183) target = $region32
      $region31: #{tpu_custom_call.1} parent=5 // pred_region
        %s187 = ssub.s32 %s16, 1
        %s188 = sand.u32 %s29, 1
        %s189 = scalar_lea.sflag [#allocation4], %s188
        %s190 = sand.u32 %s29, 1
        %s191 = smul.addr %s190, 64
        %s192 = scalar_lea.vmem [#allocation3], %s191
        // Predicated region
        $region33: #{tpu_custom_call.1} parent=31 // pred_check
          %p193 = pneg %p42
        $region34: #{tpu_custom_call.1} parent=31 // pred_check_branch
          %195 = sbr.rel (%p193) target = $region36
        $region35: #{tpu_custom_call.1} parent=31 // pred_region
          %197 = dma.done %s189, 1024
        $region36: #{tpu_custom_call.1} parent=31 // pred_fallthru
          _
        %s198 = sand.u32 %s21, 1
        %s199 = scalar_lea.sflag [#allocation7], %s198
        %s200 = sand.u32 %s55, 1
        %s201 = smul.addr %s200, 64
        %s202 = scalar_lea.vmem [#allocation6], %s201
        // Predicated region
        $region37: #{tpu_custom_call.1} parent=31 // pred_check
          %p203 = pneg %p68
        $region38: #{tpu_custom_call.1} parent=31 // pred_check_branch
          %205 = sbr.rel (%p203) target = $region40
        $region39: #{tpu_custom_call.1} parent=31 // pred_region
          %207 = dma.done %s199, 1024
        $region40: #{tpu_custom_call.1} parent=31 // pred_fallthru
          _
        // Predicated region
        $region41: #{tpu_custom_call.1} parent=31 // pred_check
          %p208 = pneg %p89
        $region42: #{tpu_custom_call.1} parent=31 // pred_check_branch
          %210 = sbr.rel (%p208) target = $region44
        $region43: #{tpu_custom_call.1} parent=31 // pred_region
          %212 = dma.done [#allocation7], 128
        $region44: #{tpu_custom_call.1} parent=31 // pred_fallthru
          _
        %s213 = sand.u32 %s29, 1
        %s214 = scalar_lea.sflag [#allocation4], %s213
        %s215 = sand.u32 %s29, 1
        %s216 = smul.addr %s215, 64
        %s217 = scalar_lea.vmem [#allocation3], %s216
        %p218 = pneg %p42
        %p219 = pneg %p39
        %s220 = sand.u32 %s21, 1
        %s221 = scalar_lea.sflag [#allocation7], %s220
        %s222 = sand.u32 %s55, 1
        %s223 = smul.addr %s222, 64
        %s224 = scalar_lea.vmem [#allocation6], %s223
        %p225 = pneg %p68
        %p226 = pneg %p65
        %p227 = pneg %p89
        %p228 = pneg %p86
        %p229 = pneg %p110
        %p230 = pneg %p107
        %p231 = scmp.eq.s32.totalorder %s21, 0
        // Predicated region
        $region45: #{tpu_custom_call.1} parent=31 // pred_check
          %p232 = pneg %p231
        $region46: #{tpu_custom_call.1} parent=31 // pred_check_branch
          %234 = sbr.rel (%p232) target = $region48
        $region47: #{tpu_custom_call.1} parent=31 // pred_region
          %235 = vst [vmem:[#allocation2] sm:$0xff] 0.0
          %236 = vst [vmem:[#allocation2 + $0x8] sm:$0xff] 0.0
          %237 = vst [vmem:[#allocation2 + $0x10] sm:$0xff] 0.0
          %238 = vst [vmem:[#allocation2 + $0x18] sm:$0xff] 0.0
          %239 = vst [vmem:[#allocation2 + $0x20] sm:$0xff] 0.0
          %240 = vst [vmem:[#allocation2 + $0x28] sm:$0xff] 0.0
          %241 = vst [vmem:[#allocation2 + $0x30] sm:$0xff] 0.0
          %vm242 = vcmask 670720
          %243 = vst.msk [vmem:[#allocation2 + $0x38] sm:$0xff] %vm242, 0.0
        $region48: #{tpu_custom_call.1} parent=31 // pred_fallthru
          _
        %v244 = vld [vmem:[%s192] sm:$0xff]
        %v245 = vld [vmem:[%s192 + $0x8] sm:$0xff]
        %v246 = vld [vmem:[%s192 + $0x10] sm:$0xff]
        %v247 = vld [vmem:[%s192 + $0x18] sm:$0xff]
        %v248 = vld [vmem:[%s192 + $0x20] sm:$0xff]
        %v249 = vld [vmem:[%s192 + $0x28] sm:$0xff]
        %v250 = vld [vmem:[%s192 + $0x30] sm:$0xff]
        %v251 = vld [vmem:[%s192 + $0x38] sm:$0xff]
        %v252 = vld [vmem:[%s202] sm:$0xff]
        %v253 = vld [vmem:[%s202 + $0x8] sm:$0xff]
        %v254 = vld [vmem:[%s202 + $0x10] sm:$0xff]
        %v255 = vld [vmem:[%s202 + $0x18] sm:$0xff]
        %v256 = vld [vmem:[%s202 + $0x20] sm:$0xff]
        %v257 = vld [vmem:[%s202 + $0x28] sm:$0xff]
        %v258 = vld [vmem:[%s202 + $0x30] sm:$0xff]
        %v259 = vld [vmem:[%s202 + $0x38] sm:$0xff]
        %v260 = vsub.f32 %v244, %v252
        %v261 = vsub.f32 %v245, %v253
        %v262 = vsub.f32 %v246, %v254
        %v263 = vsub.f32 %v247, %v255
        %v264 = vsub.f32 %v248, %v256
        %v265 = vsub.f32 %v249, %v257
        %v266 = vsub.f32 %v250, %v258
        %v267 = vsub.f32 %v251, %v259
        %v268 = vld [vmem:[#allocation2] sm:$0xff]
        %v269 = vld [vmem:[#allocation2 + $0x8] sm:$0xff]
        %v270 = vld [vmem:[#allocation2 + $0x10] sm:$0xff]
        %v271 = vld [vmem:[#allocation2 + $0x18] sm:$0xff]
        %v272 = vld [vmem:[#allocation2 + $0x20] sm:$0xff]
        %v273 = vld [vmem:[#allocation2 + $0x28] sm:$0xff]
        %v274 = vld [vmem:[#allocation2 + $0x30] sm:$0xff]
        %v275 = vld [vmem:[#allocation2 + $0x38] sm:$0xff]
        %v276 = vmul.f32 %v260, %v260
        %v277 = vmul.f32 %v261, %v261
        %v278 = vmul.f32 %v262, %v262
        %v279 = vmul.f32 %v263, %v263
        %v280 = vmul.f32 %v264, %v264
        %v281 = vmul.f32 %v265, %v265
        %v282 = vmul.f32 %v266, %v266
        %v283 = vmul.f32 %v267, %v267
        %v284 = vadd.f32 %v268, %v276
        %v285 = vadd.f32 %v269, %v277
        %v286 = vadd.f32 %v270, %v278
        %v287 = vadd.f32 %v271, %v279
        %v288 = vadd.f32 %v272, %v280
        %v289 = vadd.f32 %v273, %v281
        %v290 = vadd.f32 %v274, %v282
        %v291 = vadd.f32 %v275, %v283
        %292 = vst [vmem:[#allocation2] sm:$0xff] %v284
        %293 = vst [vmem:[#allocation2 + $0x8] sm:$0xff] %v285
        %294 = vst [vmem:[#allocation2 + $0x10] sm:$0xff] %v286
        %295 = vst [vmem:[#allocation2 + $0x18] sm:$0xff] %v287
        %296 = vst [vmem:[#allocation2 + $0x20] sm:$0xff] %v288
        %297 = vst [vmem:[#allocation2 + $0x28] sm:$0xff] %v289
        %298 = vst [vmem:[#allocation2 + $0x30] sm:$0xff] %v290
        %vm299 = vcmask 670720
        %300 = vst.msk [vmem:[#allocation2 + $0x38] sm:$0xff] %vm299, %v291
        %p301 = scmp.eq.s32.totalorder %s21, 1
        // Predicated region
        $region49: #{tpu_custom_call.1} parent=31 // pred_check
          %p302 = pneg %p301
        $region50: #{tpu_custom_call.1} parent=31 // pred_check_branch
          %304 = sbr.rel (%p302) target = $region52
        $region51: #{tpu_custom_call.1} parent=31 // pred_region
          %v305 = vld [vmem:[#allocation2] sm:$0xff]
          %v306 = vld [vmem:[#allocation2 + $0x8] sm:$0xff]
          %v307 = vld [vmem:[#allocation2 + $0x10] sm:$0xff]
          %v308 = vld [vmem:[#allocation2 + $0x18] sm:$0xff]
          %v309 = vld [vmem:[#allocation2 + $0x20] sm:$0xff]
          %v310 = vld [vmem:[#allocation2 + $0x28] sm:$0xff]
          %v311 = vld [vmem:[#allocation2 + $0x30] sm:$0xff]
          %v312 = vld [vmem:[#allocation2 + $0x38] sm:$0xff]
          %v313 = vld [vmem:[#allocation8] sm:$0xff]
          %v315 = vperm.slane %v313, 0
          %v316 = vperm.slane %v313, 1
          %v317 = vperm.slane %v313, 2
          %v318 = vperm.slane %v313, 3
          %v319 = vperm.slane %v313, 4
          %v320 = vperm.slane %v313, 5
          %v321 = vperm.slane %v313, 6
          %v322 = vperm.slane %v313, 7
          %v331 = vmul.f32 %v305, %v315
          %v332 = vmul.f32 %v306, %v316
          %v333 = vmul.f32 %v307, %v317
          %v334 = vmul.f32 %v308, %v318
          %v335 = vmul.f32 %v309, %v319
          %v336 = vmul.f32 %v310, %v320
          %v337 = vmul.f32 %v311, %v321
          %v338 = vmul.f32 %v312, %v322
          %v339 = vadd.f32 %v331, %v332
          %v340 = vadd.f32 %v339, %v333
          %v341 = vadd.f32 %v340, %v334
          %v342 = vadd.f32 %v341, %v335
          %v343 = vadd.f32 %v342, %v336
          %v344 = vadd.f32 %v343, %v337
          %v345 = vsel %vm299, %v338, 0.0
          %v346 = vadd.f32 %v344, %v345
          %347 = vadd.xlane.f32.xlu0 %v346
          %v348 = vpop.xlane.xlu0 %347
          %v349 = vrot.slane %v348, 4
          %v350 = vadd.f32 %v348, %v349
          %v351 = vrot.slane %v350, 2
          %v352 = vadd.f32 %v350, %v351
          %v353 = vrot.slane %v352, 1
          %v354 = vadd.f32 %v352, %v353
          %s355 = vtos %v354
          %s356 = scalar_lea.smem [#allocation9], 0
          %357 = sst [smem:[%s356]] %s355
        $region52: #{tpu_custom_call.1} parent=31 // pred_fallthru
          _
        // Predicated region
        $region53: #{tpu_custom_call.1} parent=31 // pred_check
          %p358 = pneg %p107
        $region54: #{tpu_custom_call.1} parent=31 // pred_check_branch
          %360 = sbr.rel (%p358) target = $region56
        $region55: #{tpu_custom_call.1} parent=31 // pred_region
          %362 = vsyncadd [#allocation5], 0
          %s364 = sshll.u32 %s3, 4
          %s365 = int_to_ptr.hbm [resolvable:$true] %s364
          %367 = dma.smem_to_hbm [#allocation9], 16, %s365, [#allocation5]
        $region56: #{tpu_custom_call.1} parent=31 // pred_fallthru
          _
        // Predicated region
        $region57: #{tpu_custom_call.1} parent=31 // pred_check
          %p368 = pneg %p107
        $region58: #{tpu_custom_call.1} parent=31 // pred_check_branch
          %370 = sbr.rel (%p368) target = $region60
        $region59: #{tpu_custom_call.1} parent=31 // pred_region
          %372 = dma.done [#allocation5], 16
        $region60: #{tpu_custom_call.1} parent=31 // pred_fallthru
          _
        %373 = sfence
      $region32: #{tpu_custom_call.1} parent=5 // pred_fallthru
        _
      %p374 = scmp.le.s32.totalorder 2, %s16
      // Predicated region
      $region61: #{tpu_custom_call.1} parent=5 // pred_check
        %p375 = pneg %p374
      $region62: #{tpu_custom_call.1} parent=5 // pred_check_branch
        %377 = sbr.rel (%p375) target = $region64
      $region63: #{tpu_custom_call.1} parent=5 // pred_region
        %s378 = ssub.s32 %s16, 2
      $region64: #{tpu_custom_call.1} parent=5 // pred_fallthru
        _
    $region6: #{tpu_custom_call.1} parent=1 // loop_footer
      %s20 = sadd.s32 1, %s16
    $region7: #{tpu_custom_call.1} parent=1 // loop_footer_branch
      %15 = sbr.rel target = $region3
    $region8: #{tpu_custom_call.1} parent=1 // loop_exit
      _
    %379 = vsyncpa [#allocation4], 1
    %s380 = scalar_lea.sflag [#allocation4], 1
    %381 = vsyncpa %s380, 1
    %382 = vsyncpa [#allocation7], 1
    %s383 = scalar_lea.sflag [#allocation7], 1
    %384 = vsyncpa %s383, 1
    %385 = vsyncpa [#allocation5], 1
    %s386 = scalar_lea.sflag [#allocation5], 1
    %387 = vsyncpa %s386, 1

</llo_original>
